<compile_context>
chip_gen: v7x
topology: tpu7x:2x2x1
jax: 0.10.0
libtpu: 0.0.40
codegen_flags: <defaults>
</compile_context>

<pallas_src>
import functools
import math

import jax
import jax.numpy as jnp
from jax.experimental import pallas as pl
from jax.experimental.pallas import tpu as pltpu


def _round_up(x, m):
    return ((x + m - 1) // m) * m


def _sublane_multiple(dtype):
    # Rows per vreg sublane group: f32 -> 8, bf16 -> 16, int8/fp8 -> 32.
    return max(8, 32 // jnp.dtype(dtype).itemsize)


def _pad2(a, rows, cols):
    r, c = a.shape
    if r == rows and c == cols:
        return a
    return jnp.pad(a, ((0, rows - r), (0, cols - c)))


def _linear_lora_kernel(x_ref, wt_ref, b_ref, xa_ref, bb_ref, o_ref,
                        acc_ref, *, scale):
    """One (i, j, k) grid step.

    x_ref  : (tm, tk)  input tile                      (native dtype)
    wt_ref : (tk, tn)  pre-transposed weight tile W.T  (native dtype)
    b_ref  : (1,  tn)  bias tile
    xa_ref : (tm, R)   precomputed x @ lora_A tile (hoisted out of the loop)
    bb_ref : (R,  tn)  lora_B tile
    o_ref  : (tm, tn)  output tile
    acc_ref: (tm, tn)  f32 accumulator scratch (persists over k)
    """
    k = pl.program_id(2)
    nk = pl.num_programs(2)

    # Base matmul partial sum for this K slab. Native-dtype operands go
    # straight to the MXU with f32 accumulation (bf16 inputs hit bf16 path).
    partial = jnp.dot(x_ref[...], wt_ref[...],
                      preferred_element_type=jnp.float32)

    @pl.when(k == 0)
    def _():
        # Overwrite: never read the never-initialised accumulator.
        acc_ref[...] = partial

    @pl.when(k != 0)
    def _():
        acc_ref[...] += partial

    @pl.when(k == nk - 1)
    def _finalize():
        # LoRA: scale applied to the tiny (tm, R) xa, not the (tm, tn) result.
        # Cast the scaled xa to lora_B's dtype (fast MXU path, no f32 upcast
        # of the (R, tn) tile).
        xa_scaled = (xa_ref[...].astype(jnp.float32) * scale).astype(bb_ref.dtype)
        lora = jnp.dot(xa_scaled, bb_ref[...],
                       preferred_element_type=jnp.float32)
        out = acc_ref[...] + b_ref[...].astype(jnp.float32) + lora
        o_ref[...] = out.astype(o_ref.dtype)


def prepare_lora_linear(w, b, lora_a, lora_b, *, tn=512, tk=512):
    """One-time parameter preparation (call at parameter-load time).

    Transposes W to [K, N] and pads the N/K dims of all parameters to tile
    multiples, so the per-call path never touches the weights in HBM before
    the kernel runs. All pads are no-ops when shapes already align.
    """
    N, K = w.shape
    Ka, R = lora_a.shape
    assert Ka == K and lora_b.shape == (R, N) and b.shape == (N,)

    tn = min(tn, _round_up(N, 128))
    tk = min(tk, _round_up(K, 128))
    Np, Kp = _round_up(N, tn), _round_up(K, tk)

    wt = _pad2(w.T, Kp, Np)                      # [Kp, Np]
    bias = _pad2(b.reshape(1, N), 1, Np)         # [1, Np]
    bb = _pad2(lora_b, R, Np)                    # [R, Np]
    return dict(wt=wt, bias=bias, lora_a=lora_a, lora_b=bb,
                N=N, K=K, R=R, tn=tn, tk=tk)


def lora_linear_apply(x, params, *, alpha=1.0, tm=512):
    """y = x @ W.T + b + (alpha/rank) * (x @ lora_A @ lora_B), prepared W."""
    N, K, R = params["N"], params["K"], params["R"]
    tn, tk = params["tn"], params["tk"]
    wt, bias, bb = params["wt"], params["bias"], params["lora_b"]
    Kp, Np = wt.shape

    M, Kx = x.shape
    assert Kx == K
    scale = float(alpha) / float(R)

    sub = _sublane_multiple(x.dtype)
    tm = min(tm, _round_up(M, sub))
    Mp = _round_up(M, tm)

    # Hoisted LoRA left matmul: tiny [M, K] @ [K, R] done once per call,
    # instead of once per (i, j, k) grid step in the kernel.
    xa = jnp.dot(x, params["lora_a"]).astype(x.dtype)

    xp = _pad2(x, Mp, Kp)      # zero K-padding contributes nothing to the dot
    xap = _pad2(xa, Mp, R)

    grid = (Mp // tm, Np // tn, Kp // tk)

    # VMEM budget: 2x double-buffered input/output tiles + f32 accumulator,
    # with lane/sublane padding of the small rank-sized tiles accounted for.
    itemsize = jnp.dtype(x.dtype).itemsize
    in_tile = (tm * tk                       # x
               + tk * tn                     # W.T
               + 8 * tn                      # bias (sublane-padded)
               + tm * _round_up(R, 128)      # xa (lane-padded)
               + _round_up(R, 8) * tn        # lora_B (sublane-padded)
               ) * itemsize
    out_tile = tm * tn * itemsize
    budget = 2 * (in_tile + out_tile) + tm * tn * 4
    vmem_limit = int(min(max(budget + (4 << 20), 32 << 20), 56 << 20))

    kernel = functools.partial(_linear_lora_kernel, scale=scale)

    out_padded = pl.pallas_call(
        kernel,
        out_shape=jax.ShapeDtypeStruct((Mp, Np), x.dtype),
        grid_spec=pltpu.PrefetchScalarGridSpec(
            num_scalar_prefetch=0,
            grid=grid,
            in_specs=[
                pl.BlockSpec((tm, tk), lambda i, j, k: (i, k)),   # x
                pl.BlockSpec((tk, tn), lambda i, j, k: (k, j)),   # W.T
                pl.BlockSpec((1, tn), lambda i, j, k: (0, j)),    # bias
                pl.BlockSpec((tm, R), lambda i, j, k: (i, 0)),    # xa = x @ A
                pl.BlockSpec((R, tn), lambda i, j, k: (0, j)),    # lora_B
            ],
            out_specs=pl.BlockSpec((tm, tn), lambda i, j, k: (i, j)),
            scratch_shapes=[
                pltpu.VMEM((tm, tn), jnp.float32),   # base accumulator
            ],
        ),
        compiler_params=pltpu.CompilerParams(
            dimension_semantics=("parallel", "parallel", "arbitrary"),
            vmem_limit_bytes=vmem_limit,
        ),
    )(xp, wt, bias, xap, bb)

    return out_padded[:M, :N]


def linear_with_lora(x, w, b, lora_a, lora_b, *, alpha=1.0,
                     tm=512, tn=512, tk=512):
    """Convenience one-shot path (prep + apply).

    For repeated calls with the same weights, call prepare_lora_linear() once
    and lora_linear_apply() per step instead.
    """
    M = x.shape[0]
    N = w.shape[0]
    sub = _sublane_multiple(x.dtype)
    # v7x megacore: if M fits in one tm block, make sure Np//tn >= 2 so both
    # TensorCores get a "parallel" block.
    if _round_up(M, sub) <= tm:
        np_min = _round_up(N, 128)
        if np_min >= 256:
            tn = min(tn, max(128, (np_min // 2) // 128 * 128))
    params = prepare_lora_linear(w, b, lora_a, lora_b, tn=tn, tk=tk)
    return lora_linear_apply(x, params, alpha=alpha, tm=tm)


def _reference(x, w, b, lora_a, lora_b, alpha):
    rank = lora_a.shape[1]
    base = x @ w.T + b
    lora = (alpha / rank) * (x @ lora_a @ lora_b)
    return base + lora


def _make_inputs(key, batch, in_features, out_features, rank, dtype=jnp.float32):
    kx, kw, kb, ka, kbb = jax.random.split(key, 5)
    x = jax.random.normal(kx, (batch, in_features), dtype=dtype)
    bound = 1.0 / math.sqrt(in_features)
    w = jax.random.uniform(kw, (out_features, in_features),
                           minval=-bound, maxval=bound, dtype=dtype)
    b = jax.random.uniform(kb, (out_features,),
                           minval=-bound, maxval=bound, dtype=dtype)
    # The PyTorch module zero-inits lora_B; use small nonzero values so the
    # LoRA path is numerically exercised.
    lora_a = jax.random.uniform(ka, (in_features, rank),
                                minval=-bound, maxval=bound, dtype=dtype)
    lora_b = 0.01 * jax.random.normal(kbb, (rank, out_features), dtype=dtype)
    return x, w, b, lora_a, lora_b


if __name__ == "__main__":
    key = jax.random.PRNGKey(0)
    k1, k2 = jax.random.split(key)

    # Case 1: tiny module-consistent shapes (single grid point after padding).
    batch, in_features, out_features, rank, alpha = 8, 32, 64, 4, 1.0
    x, w, b, la, lb = _make_inputs(k1, batch, in_features, out_features, rank)
    y = jax.block_until_ready(linear_with_lora(x, w, b, la, lb, alpha=alpha))
    y_ref = _reference(x, w, b, la, lb, alpha)
    assert y.shape == (batch, out_features)
    assert jnp.allclose(y, y_ref, atol=1e-4, rtol=1e-4), "mismatch (small case)"

    # Case 2: non-tile-multiple shapes exercising the tiled K grid, padding,
    # the >=2 parallel N-blocks heuristic, and the prepared-weights path.
    batch2, in2, out2, rank2, alpha2 = 48, 1152, 200, 4, 2.0
    x2, w2, b2, la2, lb2 = _make_inputs(k2, batch2, in2, out2, rank2)
    params2 = prepare_lora_linear(w2, b2, la2, lb2, tn=128, tk=512)
    y2 = jax.block_until_ready(
        lora_linear_apply(x2, params2, alpha=alpha2))
    y2_ref = _reference(x2, w2, b2, la2, lb2, alpha2)
    assert y2.shape == (batch2, out2)
    assert jnp.allclose(y2, y2_ref, atol=2e-3, rtol=2e-3), "mismatch (tiled case)"

    print("KERNEL_OK")
</pallas_src>

<mosaic_0001>
module attributes {stable_mosaic.version = 11 : i64} {
  func.func @_linear_lora_kernel(%arg0: i32, %arg1: i32, %arg2: i32, %arg3: memref<8x128xf32, #tpu.memory_space<vmem>>, %arg4: memref<128x128xf32, #tpu.memory_space<vmem>>, %arg5: memref<1x128xf32, #tpu.memory_space<vmem>>, %arg6: memref<8x4xf32, #tpu.memory_space<vmem>>, %arg7: memref<4x128xf32, #tpu.memory_space<vmem>>, %arg8: memref<8x128xf32, #tpu.memory_space<vmem>>, %arg9: memref<8x128xf32, #tpu.memory_space<vmem>>) attributes {dimension_semantics = [#tpu.dimension_semantics<parallel>, #tpu.dimension_semantics<parallel>, #tpu.dimension_semantics<arbitrary>], iteration_bounds = array<i64: 1, 1, 1>, scalar_prefetch = 0 : i64, scratch_operands = 1 : i64, tpu.core_type = #tpu.core_type<tc>, window_params = [{transform_indices = @transform_0, window_bounds = array<i64: 8, 128>}, {transform_indices = @transform_1, window_bounds = array<i64: 128, 128>}, {transform_indices = @transform_2, window_bounds = array<i64: 1, 128>}, {transform_indices = @transform_3, window_bounds = array<i64: 8, 4>}, {transform_indices = @transform_4, window_bounds = array<i64: 4, 128>}, {transform_indices = @transform_5, window_bounds = array<i64: 8, 128>}]} {
    %c0 = arith.constant 0 : index
    %c0_0 = arith.constant 0 : index
    %0 = vector.load %arg3[%c0, %c0_0] : memref<8x128xf32, #tpu.memory_space<vmem>>, vector<8x128xf32>
    %c0_1 = arith.constant 0 : index
    %c0_2 = arith.constant 0 : index
    %1 = vector.load %arg4[%c0_1, %c0_2] : memref<128x128xf32, #tpu.memory_space<vmem>>, vector<128x128xf32>
    %cst = arith.constant dense<0.000000e+00> : vector<8x128xf32>
    %2 = tpu.matmul %0, %1, %cst {dimension_numbers = #tpu.dot_dimension_numbers<[1], [0], [0], [1], [0, 0, 1, 1], [], []>} : vector<8x128xf32>, vector<128x128xf32>, vector<8x128xf32> -> vector<8x128xf32>
    %c0_i32 = arith.constant 0 : i32
    %3 = arith.cmpi eq, %arg2, %c0_i32 : i32
    %4 = arith.extui %3 : i1 to i32
    %c0_i32_3 = arith.constant 0 : i32
    %5 = arith.cmpi ne, %4, %c0_i32_3 : i32
    scf.if %5 {
      %c0_8 = arith.constant 0 : index
      %c0_9 = arith.constant 0 : index
      %12 = vector.load %arg9[%c0_8, %c0_9] : memref<8x128xf32, #tpu.memory_space<vmem>>, vector<8x128xf32>
      tpu.vector_store %arg9[%c0_8, %c0_9], %2 {strides = array<i32>} : memref<8x128xf32, #tpu.memory_space<vmem>>, vector<8x128xf32>,
    } else {
    }
    %c0_i32_4 = arith.constant 0 : i32
    %6 = arith.cmpi ne, %arg2, %c0_i32_4 : i32
    %7 = arith.extui %6 : i1 to i32
    %c0_i32_5 = arith.constant 0 : i32
    %8 = arith.cmpi ne, %7, %c0_i32_5 : i32
    scf.if %8 {
      %c0_8 = arith.constant 0 : index
      %c0_9 = arith.constant 0 : index
      %12 = vector.load %arg9[%c0_8, %c0_9] : memref<8x128xf32, #tpu.memory_space<vmem>>, vector<8x128xf32>
      %13 = arith.addf %12, %2 : vector<8x128xf32>
      %c0_10 = arith.constant 0 : index
      %c0_11 = arith.constant 0 : index
      %14 = vector.load %arg9[%c0_10, %c0_11] : memref<8x128xf32, #tpu.memory_space<vmem>>, vector<8x128xf32>
      tpu.vector_store %arg9[%c0_10, %c0_11], %13 {strides = array<i32>} : memref<8x128xf32, #tpu.memory_space<vmem>>, vector<8x128xf32>,
    } else {
    }
    %c0_i32_6 = arith.constant 0 : i32
    %9 = arith.cmpi eq, %arg2, %c0_i32_6 : i32
    %10 = arith.extui %9 : i1 to i32
    %c0_i32_7 = arith.constant 0 : i32
    %11 = arith.cmpi ne, %10, %c0_i32_7 : i32
    scf.if %11 {
      %c0_8 = arith.constant 0 : index
      %c0_9 = arith.constant 0 : index
      %12 = vector.load %arg6[%c0_8, %c0_9] : memref<8x4xf32, #tpu.memory_space<vmem>>, vector<8x4xf32>
      %cst_10 = arith.constant 2.500000e-01 : f32
      %13 = vector.broadcast %cst_10 : f32 to vector<8x4xf32>
      %14 = arith.mulf %12, %13 : vector<8x4xf32>
      %c0_11 = arith.constant 0 : index
      %c0_12 = arith.constant 0 : index
      %15 = vector.load %arg7[%c0_11, %c0_12] : memref<4x128xf32, #tpu.memory_space<vmem>>, vector<4x128xf32>
      %cst_13 = arith.constant dense<0.000000e+00> : vector<8x128xf32>
      %16 = tpu.matmul %14, %15, %cst_13 {dimension_numbers = #tpu.dot_dimension_numbers<[1], [0], [0], [1], [0, 0, 1, 1], [], []>} : vector<8x4xf32>, vector<4x128xf32>, vector<8x128xf32> -> vector<8x128xf32>
      %c0_14 = arith.constant 0 : index
      %c0_15 = arith.constant 0 : index
      %17 = vector.load %arg9[%c0_14, %c0_15] : memref<8x128xf32, #tpu.memory_space<vmem>>, vector<8x128xf32>
      %c0_16 = arith.constant 0 : index
      %c0_17 = arith.constant 0 : index
      %18 = vector.load %arg5[%c0_16, %c0_17] : memref<1x128xf32, #tpu.memory_space<vmem>>, vector<1x128xf32>
      %19 = vector.broadcast %18 : vector<1x128xf32> to vector<8x128xf32>
      %20 = arith.addf %17, %19 : vector<8x128xf32>
      %21 = arith.addf %20, %16 : vector<8x128xf32>
      %c0_18 = arith.constant 0 : index
      %c0_19 = arith.constant 0 : index
      %22 = vector.load %arg8[%c0_18, %c0_19] : memref<8x128xf32, #tpu.memory_space<vmem>>, vector<8x128xf32>
      tpu.vector_store %arg8[%c0_18, %c0_19], %21 {strides = array<i32>} : memref<8x128xf32, #tpu.memory_space<vmem>>, vector<8x128xf32>,
    } else {
    }
    return
  }
  func.func @transform_0(%arg0: i32, %arg1: i32, %arg2: i32) -> (i32, i32) {
    %c0_i32 = arith.constant 0 : i32
    return %arg0, %arg2 : i32, i32
  }
  func.func @transform_1(%arg0: i32, %arg1: i32, %arg2: i32) -> (i32, i32) {
    %c0_i32 = arith.constant 0 : i32
    return %arg2, %arg1 : i32, i32
  }
  func.func @transform_2(%arg0: i32, %arg1: i32, %arg2: i32) -> (i32, i32) {
    %c0_i32 = arith.constant 0 : i32
    %c0_i32_0 = arith.constant 0 : i32
    return %c0_i32, %arg1 : i32, i32
  }
  func.func @transform_3(%arg0: i32, %arg1: i32, %arg2: i32) -> (i32, i32) {
    %c0_i32 = arith.constant 0 : i32
    %c0_i32_0 = arith.constant 0 : i32
    return %arg0, %c0_i32 : i32, i32
  }
  func.func @transform_4(%arg0: i32, %arg1: i32, %arg2: i32) -> (i32, i32) {
    %c0_i32 = arith.constant 0 : i32
    %c0_i32_0 = arith.constant 0 : i32
    return %c0_i32, %arg1 : i32, i32
  }
  func.func @transform_5(%arg0: i32, %arg1: i32, %arg2: i32) -> (i32, i32) {
    %c0_i32 = arith.constant 0 : i32
    return %arg0, %arg1 : i32, i32
  }
}

</mosaic_0001>

<llo_original>
// kernel: tpu_custom_call.1
$region0: #{tpu_custom_call.1}
  #allocation0 [shape = 'u32[]', space=smem, size = 0x4, offset = 0x4, fixed_abs, tag = 'smem constant byte address 0x4 - core index']
  #allocation1 [shape = 'u32[144,128]{1,0:T(1,128)}', space=vmem, size = 0x12000, scoped, tag = 'internal scratch']
  #allocation2 [shape = 'f32[8,128]{1,0:T(8,128)}', space=vmem, size = 0x1000, scoped, tag = 'scratch operand']
  %s0 = inlined_call_operand.vmem [shape: f32[8,128], index: 0, kind: input, shape index: {}]
  %s1 = inlined_call_operand.hbm [shape: f32[128,128], index: 1, kind: input, shape index: {}]
  %s2 = inlined_call_operand.vmem [shape: f32[1,128], index: 2, kind: input, shape index: {}]
  %s3 = inlined_call_operand.vmem [shape: f32[8,4], index: 3, kind: input, shape index: {}]
  %s4 = inlined_call_operand.vmem [shape: f32[4,128], index: 4, kind: input, shape index: {}]
  %s5 = inlined_call_operand.hbm [shape: f32[8,128], index: 5, kind: output, shape index: {}]
  %s6 = sld [smem:[#allocation0]]
  $region46: #{tpu_custom_call.1} parent=0
    _
  %s8 = ssub.s32 1, %s6
  %s9 = scalar_select 0, %s8, %s6
  $region1: #{tpu_custom_call.1} parent=0
    #allocation3 [shape = 'u8[65536]{0}', space=vmem, size = 0x10000, scoped, tag = 'input window, operand 1, single buffered']
    #allocation4 [shape = 's32[1]{0}', space=sflag, size = 0x4, scoped, tag = 'scoped memory for tpu_custom_call.1']
    #allocation5 [shape = 's32[1]{0}', space=sflag, size = 0x4, scoped, tag = 'scoped memory for tpu_custom_call.1']
    #allocation6 [shape = 'u8[4096]{0}', space=vmem, size = 0x1000, scoped, tag = 'output window, operand 0, single buffered']
    %10 = vsyncpa [#allocation4], 0
    %11 = vsyncpa [#allocation5], 0
    // Predicated region
    $region2: #{tpu_custom_call.1} parent=1 // pred_check
      _
    $region3: #{tpu_custom_call.1} parent=1 // pred_check_branch
      %13 = sbr.rel (0) target = $region5
    $region4: #{tpu_custom_call.1} parent=1 // pred_region
      _
    $region5: #{tpu_custom_call.1} parent=1 // pred_fallthru
      _
    // Predicated region
    $region6: #{tpu_custom_call.1} parent=1 // pred_check
      _
    $region7: #{tpu_custom_call.1} parent=1 // pred_check_branch
      %15 = sbr.rel (0) target = $region9
    $region8: #{tpu_custom_call.1} parent=1 // pred_region
      %s17 = ssub.s32 2048, 2048
      %18 = vsyncadd [#allocation4], %s17
      %s19 = sshll.u32 [#allocation3], 4
      %s20 = int_to_ptr.vmem [resolvable:$true] %s19
      %25 = dma.hbm_to_vmem [thread:$0]  %s1, 2048, %s20, [#allocation4], 128, 128, 8
    $region9: #{tpu_custom_call.1} parent=1 // pred_fallthru
      _
    // Predicated region
    $region10: #{tpu_custom_call.1} parent=1 // pred_check
      _
    $region11: #{tpu_custom_call.1} parent=1 // pred_check_branch
      %27 = sbr.rel (0) target = $region13
    $region12: #{tpu_custom_call.1} parent=1 // pred_region
      _
    $region13: #{tpu_custom_call.1} parent=1 // pred_fallthru
      _
    // Predicated region
    $region14: #{tpu_custom_call.1} parent=1 // pred_check
      _
    $region15: #{tpu_custom_call.1} parent=1 // pred_check_branch
      %29 = sbr.rel (0) target = $region17
    $region16: #{tpu_custom_call.1} parent=1 // pred_region
      _
    $region17: #{tpu_custom_call.1} parent=1 // pred_fallthru
      _
    // Predicated region
    $region18: #{tpu_custom_call.1} parent=1 // pred_check
      _
    $region19: #{tpu_custom_call.1} parent=1 // pred_check_branch
      %31 = sbr.rel (0) target = $region21
    $region20: #{tpu_custom_call.1} parent=1 // pred_region
      _
    $region21: #{tpu_custom_call.1} parent=1 // pred_fallthru
      _
    // Predicated region
    $region22: #{tpu_custom_call.1} parent=1 // pred_check
      _
    $region23: #{tpu_custom_call.1} parent=1 // pred_check_branch
      %33 = sbr.rel (0) target = $region25
    $region24: #{tpu_custom_call.1} parent=1 // pred_region
      %34 = dma.done [#allocation4], 2048
    $region25: #{tpu_custom_call.1} parent=1 // pred_fallthru
      _
    %v35 = vld [vmem:[%s0] sm:$0xff]
    %v36 = vld [vmem:[#allocation3] sm:$0xff]
    %v37 = vld [vmem:[#allocation3 + $0x8] sm:$0xff]
    %v38 = vld [vmem:[#allocation3 + $0x10] sm:$0xff]
    %v39 = vld [vmem:[#allocation3 + $0x18] sm:$0xff]
    %v40 = vld [vmem:[#allocation3 + $0x20] sm:$0xff]
    %v41 = vld [vmem:[#allocation3 + $0x28] sm:$0xff]
    %v42 = vld [vmem:[#allocation3 + $0x30] sm:$0xff]
    %v43 = vld [vmem:[#allocation3 + $0x38] sm:$0xff]
    %v44 = vld [vmem:[#allocation3 + $0x40] sm:$0xff]
    %v45 = vld [vmem:[#allocation3 + $0x48] sm:$0xff]
    %v46 = vld [vmem:[#allocation3 + $0x50] sm:$0xff]
    %v47 = vld [vmem:[#allocation3 + $0x58] sm:$0xff]
    %v48 = vld [vmem:[#allocation3 + $0x60] sm:$0xff]
    %v49 = vld [vmem:[#allocation3 + $0x68] sm:$0xff]
    %v50 = vld [vmem:[#allocation3 + $0x70] sm:$0xff]
    %v51 = vld [vmem:[#allocation3 + $0x78] sm:$0xff]
    %52 = vmatprep.subr.mxu0 0.0
    %53 = vmatpush1.msra.mxu0 %v36
    %54 = vmatprep.subr.mxu0 0.0
    %55 = vmatpush1.msra.mxu0 %v37
    %56 = vmatprep.subr.mxu0 0.0
    %57 = vmatpush1.msra.mxu0 %v38
    %58 = vmatprep.subr.mxu0 0.0
    %59 = vmatpush1.msra.mxu0 %v39
    %60 = vmatprep.subr.mxu0 0.0
    %61 = vmatpush1.msra.mxu0 %v40
    %62 = vmatprep.subr.mxu0 0.0
    %63 = vmatpush1.msra.mxu0 %v41
    %64 = vmatprep.subr.mxu0 0.0
    %65 = vmatpush1.msra.mxu0 %v42
    %66 = vmatprep.subr.mxu0 0.0
    %67 = vmatpush1.msra.mxu0 %v43
    %68 = vmatprep.subr.mxu0 0.0
    %69 = vmatpush1.msra.mxu0 %v44
    %70 = vmatprep.subr.mxu0 0.0
    %71 = vmatpush1.msra.mxu0 %v45
    %72 = vmatprep.subr.mxu0 0.0
    %73 = vmatpush1.msra.mxu0 %v46
    %74 = vmatprep.subr.mxu0 0.0
    %75 = vmatpush1.msra.mxu0 %v47
    %76 = vmatprep.subr.mxu0 0.0
    %77 = vmatpush1.msra.mxu0 %v48
    %78 = vmatprep.subr.mxu0 0.0
    %79 = vmatpush1.msra.mxu0 %v49
    %80 = vmatprep.subr.mxu0 0.0
    %81 = vmatpush1.msra.mxu0 %v50
    %82 = vmatprep.subr.mxu0 0.0
    %83 = vmatpush1.msra.mxu0 %v51
    %84 = vmatprep.subr.mxu0 0.0
    %85 = vmatpush1.msra.mxu0 0.0
    %86 = vmatprep.subr.mxu0 0.0
    %87 = vmatpush1.msra.mxu0 0.0
    %88 = vmatprep.subr.mxu0 0.0
    %89 = vmatpush1.msra.mxu0 0.0
    %90 = vmatprep.subr.mxu0 0.0
    %91 = vmatpush1.msra.mxu0 0.0
    %92 = vmatprep.subr.mxu0 0.0
    %93 = vmatpush1.msra.mxu0 0.0
    %94 = vmatprep.subr.mxu0 0.0
    %95 = vmatpush1.msra.mxu0 0.0
    %96 = vmatprep.subr.mxu0 0.0
    %97 = vmatpush1.msra.mxu0 0.0
    %98 = vmatprep.subr.mxu0 0.0
    %99 = vmatpush1.msra.mxu0 0.0
    %100 = vmatprep.subr.mxu0 0.0
    %101 = vmatpush1.msra.mxu0 0.0
    %102 = vmatprep.subr.mxu0 0.0
    %103 = vmatpush1.msra.mxu0 0.0
    %104 = vmatprep.subr.mxu0 0.0
    %105 = vmatpush1.msra.mxu0 0.0
    %106 = vmatprep.subr.mxu0 0.0
    %107 = vmatpush1.msra.mxu0 0.0
    %108 = vmatprep.subr.mxu0 0.0
    %109 = vmatpush1.msra.mxu0 0.0
    %110 = vmatprep.subr.mxu0 0.0
    %111 = vmatpush1.msra.mxu0 0.0
    %112 = vmatprep.subr.mxu0 0.0
    %113 = vmatpush1.msra.mxu0 0.0
    %114 = vmatprep.subr.mxu0 0.0
    %115 = vmatpush1.msra.mxu0 0.0
    %116 = vmatprep.mubr.f32.mxu0 0.0
    %117 = vmatmul.mubr.f32.gmra.mrb[0].mxu0 %v35
    %v118 = vpop.f32.mrb[0].mxu0
    %v119 = vadd.f32 0.0, %v118
    %v120 = vpop.f32.mrb[0].mxu0
    %121 = vdwg.mxu0
    %p122 = scmp.eq.s32.totalorder 0, 0
    // Predicated region
    $region26: #{tpu_custom_call.1} parent=1 // pred_check
      %p123 = pneg %p122
    $region27: #{tpu_custom_call.1} parent=1 // pred_check_branch
      %125 = sbr.rel (%p123) target = $region29
    $region28: #{tpu_custom_call.1} parent=1 // pred_region
      %126 = vst [vmem:[#allocation2] sm:$0xff] %v119
    $region29: #{tpu_custom_call.1} parent=1 // pred_fallthru
      _
    %p127 = scmp.ne.s32.totalorder 0, 0
    // Predicated region
    $region30: #{tpu_custom_call.1} parent=1 // pred_check
      %p128 = pneg %p127
    $region31: #{tpu_custom_call.1} parent=1 // pred_check_branch
      %130 = sbr.rel (%p128) target = $region33
    $region32: #{tpu_custom_call.1} parent=1 // pred_region
      %v131 = vld [vmem:[#allocation2] sm:$0xff]
      %v132 = vadd.f32 %v131, %v119
      %133 = vst [vmem:[#allocation2] sm:$0xff] %v132
    $region33: #{tpu_custom_call.1} parent=1 // pred_fallthru
      _
    // Predicated region
    $region34: #{tpu_custom_call.1} parent=1 // pred_check
      %p134 = pneg %p122
    $region35: #{tpu_custom_call.1} parent=1 // pred_check_branch
      %136 = sbr.rel (%p134) target = $region37
    $region36: #{tpu_custom_call.1} parent=1 // pred_region
      %v137 = vld [vmem:[%s3] sm:$0xff]
      %v138 = vmul.f32 %v137, 0.25
      %v139 = vld [vmem:[%s4] sm:$0xf]
      %vm140 = vcmask 31744
      %v142 = vsel %vm140, %v138, 0
      %vm144 = vcmask 1043456
      %v146 = vsel %vm144, %v139, 0
      %148 = vmatprep.subr.mxu0 0.0
      %149 = vmatpush1.msra.mxu0 %v146
      %150 = vmatprep.subr.mxu0 0.0
      %151 = vmatpush1.msra.mxu0 0.0
      %152 = vmatprep.subr.mxu0 0.0
      %153 = vmatpush1.msra.mxu0 0.0
      %154 = vmatprep.subr.mxu0 0.0
      %155 = vmatpush1.msra.mxu0 0.0
      %156 = vmatprep.subr.mxu0 0.0
      %157 = vmatpush1.msra.mxu0 0.0
      %158 = vmatprep.subr.mxu0 0.0
      %159 = vmatpush1.msra.mxu0 0.0
      %160 = vmatprep.subr.mxu0 0.0
      %161 = vmatpush1.msra.mxu0 0.0
      %162 = vmatprep.subr.mxu0 0.0
      %163 = vmatpush1.msra.mxu0 0.0
      %164 = vmatprep.subr.mxu0 0.0
      %165 = vmatpush1.msra.mxu0 0.0
      %166 = vmatprep.subr.mxu0 0.0
      %167 = vmatpush1.msra.mxu0 0.0
      %168 = vmatprep.subr.mxu0 0.0
      %169 = vmatpush1.msra.mxu0 0.0
      %170 = vmatprep.subr.mxu0 0.0
      %171 = vmatpush1.msra.mxu0 0.0
      %172 = vmatprep.subr.mxu0 0.0
      %173 = vmatpush1.msra.mxu0 0.0
      %174 = vmatprep.subr.mxu0 0.0
      %175 = vmatpush1.msra.mxu0 0.0
      %176 = vmatprep.subr.mxu0 0.0
      %177 = vmatpush1.msra.mxu0 0.0
      %178 = vmatprep.subr.mxu0 0.0
      %179 = vmatpush1.msra.mxu0 0.0
      %180 = vmatprep.subr.mxu0 0.0
      %181 = vmatpush1.msra.mxu0 0.0
      %182 = vmatprep.subr.mxu0 0.0
      %183 = vmatpush1.msra.mxu0 0.0
      %184 = vmatprep.subr.mxu0 0.0
      %185 = vmatpush1.msra.mxu0 0.0
      %186 = vmatprep.subr.mxu0 0.0
      %187 = vmatpush1.msra.mxu0 0.0
      %188 = vmatprep.subr.mxu0 0.0
      %189 = vmatpush1.msra.mxu0 0.0
      %190 = vmatprep.subr.mxu0 0.0
      %191 = vmatpush1.msra.mxu0 0.0
      %192 = vmatprep.subr.mxu0 0.0
      %193 = vmatpush1.msra.mxu0 0.0
      %194 = vmatprep.subr.mxu0 0.0
      %195 = vmatpush1.msra.mxu0 0.0
      %196 = vmatprep.subr.mxu0 0.0
      %197 = vmatpush1.msra.mxu0 0.0
      %198 = vmatprep.subr.mxu0 0.0
      %199 = vmatpush1.msra.mxu0 0.0
      %200 = vmatprep.subr.mxu0 0.0
      %201 = vmatpush1.msra.mxu0 0.0
      %202 = vmatprep.subr.mxu0 0.0
      %203 = vmatpush1.msra.mxu0 0.0
      %204 = vmatprep.subr.mxu0 0.0
      %205 = vmatpush1.msra.mxu0 0.0
      %206 = vmatprep.subr.mxu0 0.0
      %207 = vmatpush1.msra.mxu0 0.0
      %208 = vmatprep.subr.mxu0 0.0
      %209 = vmatpush1.msra.mxu0 0.0
      %210 = vmatprep.subr.mxu0 0.0
      %211 = vmatpush1.msra.mxu0 0.0
      %212 = vmatprep.mubr.f32.mxu0 0.0
      %213 = vmatmul.mubr.f32.gmra.mrb[0].mxu0 %v142
      %v214 = vpop.f32.mrb[0].mxu0
      %v215 = vadd.f32 0.0, %v214
      %v216 = vpop.f32.mrb[0].mxu0
      %217 = vdwg.mxu0
      %v218 = vld [vmem:[#allocation2] sm:$0xff]
      %v219 = vld [vmem:[%s2] sm:$0x1]
      %v221 = vlaneseq
      %v222 = vshrl.u32 %v221, 7
      %v223 = vsub.s32 0, %v222
      %v224 = vrot.slane %v219, %v223
      %v226 = vadd.f32 %v218, %v224
      %v227 = vadd.f32 %v226, %v215
      %228 = vst [vmem:[#allocation6] sm:$0xff] %v227
    $region37: #{tpu_custom_call.1} parent=1 // pred_fallthru
      _
    // Predicated region
    $region38: #{tpu_custom_call.1} parent=1 // pred_check
      _
    $region39: #{tpu_custom_call.1} parent=1 // pred_check_branch
      %230 = sbr.rel (0) target = $region41
    $region40: #{tpu_custom_call.1} parent=1 // pred_region
      %s232 = ssub.s32 128, 128
      %233 = vsyncadd [#allocation5], %s232
      %s235 = sshll.u32 [#allocation6], 4
      %s236 = int_to_ptr.vmem [resolvable:$true] %s235
      %238 = dma.vmem_to_hbm [thread:$0]  %s236, 128, %s5, [#allocation5]
    $region41: #{tpu_custom_call.1} parent=1 // pred_fallthru
      _
    // Predicated region
    $region42: #{tpu_custom_call.1} parent=1 // pred_check
      _
    $region43: #{tpu_custom_call.1} parent=1 // pred_check_branch
      %240 = sbr.rel (0) target = $region45
    $region44: #{tpu_custom_call.1} parent=1 // pred_region
      %241 = dma.done [#allocation5], 128
    $region45: #{tpu_custom_call.1} parent=1 // pred_fallthru
      _
    %242 = vsyncpa [#allocation4], 1
    %243 = vsyncpa [#allocation5], 1

</llo_original>
